<compile_context>
chip_gen: v6e
topology: v6e:2x2x1
jax: 0.10.0
libtpu: 0.0.40
codegen_flags: <defaults>
</compile_context>

<pallas_src>
import functools

import jax
import jax.numpy as jnp
from jax.experimental import pallas as pl
from jax.experimental.pallas import tpu as pltpu


def _round_up(x, m):
    return (x + m - 1) // m * m


def _crossnet_kernel(x0_ref, w_ref, b_ref, out_ref, *, num_layers, compute_dtype):
    # X0 and the running carry stay fp32; cast X0 once per batch tile
    # (not once per layer).
    x0 = x0_ref[...].astype(jnp.float32)               # (TB, D)
    xi = x0
    for l in range(num_layers):                        # static unroll over layers
        # W was pre-transposed to (in, out) in the wrapper -> plain xi @ W[l],
        # fed to the MXU in compute_dtype with fp32 accumulation.
        lin = jnp.dot(xi.astype(compute_dtype), w_ref[l],
                      preferred_element_type=jnp.float32)
        lin = lin + b_ref[l].astype(jnp.float32)       # (1, D) sublane broadcast
        xi = xi + x0 * lin                             # CrossNetV2 update (VPU, fp32)
        out_ref[l] = xi.astype(out_ref.dtype)


def crossnet_v2_forward(x0, weights, biases, *, tb=None, compute_dtype=jnp.bfloat16):
    """CrossNetV2 forward.

    x0:      (B, D)
    weights: (L, D, D)  PyTorch nn.Linear layout, i.e. out = x @ W.T + b
    biases:  (L, D)
    Returns the list [X_1, ..., X_L] of (B, D) arrays.
    """
    B, D = x0.shape
    L = weights.shape[0]

    # Pre-transpose once to (in, out) so the kernel never transposes.
    w_t = jnp.swapaxes(weights, 1, 2).astype(compute_dtype)       # (L, D, D)
    b = biases.astype(jnp.float32)                                # (L, D)

    # Pad feature dim to a lane-dense multiple of 128; pad batch to the tile.
    D_pad = _round_up(D, 128)
    if tb is None:
        tb = min(512, _round_up(B, 8))
    tb = _round_up(tb, 8)
    B_pad = _round_up(B, tb)

    if D_pad != D:
        w_t = jnp.pad(w_t, ((0, 0), (0, D_pad - D), (0, D_pad - D)))
        b = jnp.pad(b, ((0, 0), (0, D_pad - D)))
    b = b.reshape(L, 1, D_pad)                                    # avoid 1-D bias ref
    x0_p = x0
    if D_pad != D or B_pad != B:
        x0_p = jnp.pad(x0, ((0, B_pad - B), (0, D_pad - D)))

    # Rough VMEM budget for this tiling (resident weights + double-buffered
    # x0/out tiles + fp32 temporaries), clamped to a safe range.
    w_item = jnp.dtype(compute_dtype).itemsize
    o_item = jnp.dtype(x0.dtype).itemsize
    est = (L * D_pad * D_pad * w_item          # resident weights (all layers)
           + 2 * tb * D_pad * 4                # x0 tile, double-buffered
           + 2 * L * tb * D_pad * o_item       # output tile, double-buffered
           + L * 8 * D_pad * 4                 # biases (sublane-padded)
           + 6 * tb * D_pad * 4)               # xi / lin fp32 temporaries
    vmem_limit = int(min(100 * 2**20, max(32 * 2**20, int(est * 1.5))))
    # TODO(synk): for very large L*D^2 that exceeds VMEM, fall back to a
    # (batch, layer) grid with a persistent-scratch carry instead of
    # weight-resident unrolling.

    kernel = functools.partial(
        _crossnet_kernel, num_layers=L, compute_dtype=compute_dtype)

    out = pl.pallas_call(
        kernel,
        out_shape=jax.ShapeDtypeStruct((L, B_pad, D_pad), x0.dtype),
        grid_spec=pltpu.PrefetchScalarGridSpec(
            num_scalar_prefetch=0,
            grid=(B_pad // tb,),
            in_specs=[
                pl.BlockSpec((tb, D_pad), lambda i: (i, 0)),            # X0 tile
                pl.BlockSpec((L, D_pad, D_pad), lambda i: (0, 0, 0)),   # all W (resident)
                pl.BlockSpec((L, 1, D_pad), lambda i: (0, 0, 0)),       # all b (resident)
            ],
            out_specs=pl.BlockSpec((L, tb, D_pad), lambda i: (0, i, 0)),
        ),
        compiler_params=pltpu.CompilerParams(
            dimension_semantics=("parallel",),   # batch tiles are independent
            vmem_limit_bytes=vmem_limit,
        ),
    )(x0_p, w_t, b)

    return [out[l, :B, :D] for l in range(L)]


def _reference(x0, weights, biases):
    """Pure-JAX fp32 reference matching the PyTorch forward."""
    xi = x0
    outs = []
    for l in range(weights.shape[0]):
        lin = xi @ weights[l].T + biases[l]
        xi = xi + x0 * lin
        outs.append(xi)
    return outs


if __name__ == "__main__":
    key = jax.random.PRNGKey(0)

    # --- main test: small, unaligned shapes (exercises the padding path) -----
    B, D, L = 8, 32, 3
    k_x, k_w, k_b = jax.random.split(key, 3)
    x0 = jax.random.normal(k_x, (B, D), dtype=jnp.float32)
    bound = 1.0 / jnp.sqrt(jnp.float32(D))
    weights = jax.random.uniform(k_w, (L, D, D), jnp.float32, -bound, bound)
    biases = jax.random.uniform(k_b, (L, D), jnp.float32, -bound, bound)
    refs = _reference(x0, weights, biases)

    # fp32 compute path: exact-semantics check (tight tolerance).
    outs_f32 = crossnet_v2_forward(x0, weights, biases, compute_dtype=jnp.float32)
    outs_f32 = [jax.block_until_ready(o) for o in outs_f32]
    for o, r in zip(outs_f32, refs):
        assert o.shape == (B, D)
        assert jnp.allclose(o, r, atol=1e-4, rtol=1e-4)

    # bf16 MXU-feed path (the fast configuration): looser tolerance.
    outs_bf16 = crossnet_v2_forward(x0, weights, biases, compute_dtype=jnp.bfloat16)
    outs_bf16 = [jax.block_until_ready(o) for o in outs_bf16]
    for o, r in zip(outs_bf16, refs):
        assert o.shape == (B, D)
        assert jnp.allclose(o, r, atol=5e-2, rtol=5e-2)

    # --- secondary test: lane-aligned shapes, multiple batch tiles -----------
    B2, D2, L2 = 16, 128, 2
    k_x2, k_w2, k_b2 = jax.random.split(jax.random.PRNGKey(1), 3)
    x0_2 = jax.random.normal(k_x2, (B2, D2), dtype=jnp.float32)
    bound2 = 1.0 / jnp.sqrt(jnp.float32(D2))
    w2 = jax.random.uniform(k_w2, (L2, D2, D2), jnp.float32, -bound2, bound2)
    b2 = jax.random.uniform(k_b2, (L2, D2), jnp.float32, -bound2, bound2)
    outs2 = crossnet_v2_forward(x0_2, w2, b2, tb=8, compute_dtype=jnp.float32)
    outs2 = [jax.block_until_ready(o) for o in outs2]
    refs2 = _reference(x0_2, w2, b2)
    for o, r in zip(outs2, refs2):
        assert o.shape == (B2, D2)
        assert jnp.allclose(o, r, atol=1e-4, rtol=1e-4)

    print("KERNEL_OK")
</pallas_src>

<mosaic_0001>
module attributes {stable_mosaic.version = 11 : i64} {
  func.func @_crossnet_kernel(%arg0: i32, %arg1: memref<8x128xf32, #tpu.memory_space<vmem>>, %arg2: memref<3x128x128xf32, #tpu.memory_space<vmem>>, %arg3: memref<3x1x128xf32, #tpu.memory_space<vmem>>, %arg4: memref<3x8x128xf32, #tpu.memory_space<vmem>>) attributes {dimension_semantics = [#tpu.dimension_semantics<parallel>], iteration_bounds = array<i64: 1>, scalar_prefetch = 0 : i64, scratch_operands = 0 : i64, tpu.core_type = #tpu.core_type<tc>, window_params = [{transform_indices = @transform_0, window_bounds = array<i64: 8, 128>}, {pipeline_mode = #tpu.pipeline_mode<synchronous>, transform_indices = @transform_1, window_bounds = array<i64: 3, 128, 128>}, {pipeline_mode = #tpu.pipeline_mode<synchronous>, transform_indices = @transform_2, window_bounds = array<i64: 3, 1, 128>}, {transform_indices = @transform_3, window_bounds = array<i64: 3, 8, 128>}]} {
    %c0 = arith.constant 0 : index
    %c0_0 = arith.constant 0 : index
    %0 = vector.load %arg1[%c0, %c0_0] : memref<8x128xf32, #tpu.memory_space<vmem>>, vector<8x128xf32>
    %c0_1 = arith.constant 0 : index
    %c0_2 = arith.constant 0 : index
    %c0_3 = arith.constant 0 : index
    %1 = vector.load %arg2[%c0_1, %c0_2, %c0_3] : memref<3x128x128xf32, #tpu.memory_space<vmem>>, vector<1x128x128xf32>
    %2 = vector.shape_cast %1 : vector<1x128x128xf32> to vector<128x128xf32>
    %cst = arith.constant dense<0.000000e+00> : vector<8x128xf32>
    %3 = tpu.matmul %0, %2, %cst {dimension_numbers = #tpu.dot_dimension_numbers<[1], [0], [0], [1], [0, 0, 1, 1], [], []>} : vector<8x128xf32>, vector<128x128xf32>, vector<8x128xf32> -> vector<8x128xf32>
    %c0_4 = arith.constant 0 : index
    %c0_5 = arith.constant 0 : index
    %c0_6 = arith.constant 0 : index
    %4 = vector.load %arg3[%c0_4, %c0_5, %c0_6] : memref<3x1x128xf32, #tpu.memory_space<vmem>>, vector<1x1x128xf32>
    %5 = vector.shape_cast %4 : vector<1x1x128xf32> to vector<1x128xf32>
    %6 = vector.broadcast %5 : vector<1x128xf32> to vector<8x128xf32>
    %7 = arith.addf %3, %6 : vector<8x128xf32>
    %8 = arith.mulf %0, %7 : vector<8x128xf32>
    %9 = arith.addf %0, %8 : vector<8x128xf32>
    %c0_7 = arith.constant 0 : index
    %c0_8 = arith.constant 0 : index
    %c0_9 = arith.constant 0 : index
    %10 = vector.load %arg4[%c0_7, %c0_8, %c0_9] : memref<3x8x128xf32, #tpu.memory_space<vmem>>, vector<1x8x128xf32>
    %11 = vector.shape_cast %10 : vector<1x8x128xf32> to vector<8x128xf32>
    %12 = vector.shape_cast %9 : vector<8x128xf32> to vector<1x8x128xf32>
    tpu.vector_store %arg4[%c0_7, %c0_8, %c0_9], %12 {strides = array<i32>} : memref<3x8x128xf32, #tpu.memory_space<vmem>>, vector<1x8x128xf32>,
    %c1 = arith.constant 1 : index
    %c0_10 = arith.constant 0 : index
    %c0_11 = arith.constant 0 : index
    %13 = vector.load %arg2[%c1, %c0_10, %c0_11] : memref<3x128x128xf32, #tpu.memory_space<vmem>>, vector<1x128x128xf32>
    %14 = vector.shape_cast %13 : vector<1x128x128xf32> to vector<128x128xf32>
    %cst_12 = arith.constant dense<0.000000e+00> : vector<8x128xf32>
    %15 = tpu.matmul %9, %14, %cst_12 {dimension_numbers = #tpu.dot_dimension_numbers<[1], [0], [0], [1], [0, 0, 1, 1], [], []>} : vector<8x128xf32>, vector<128x128xf32>, vector<8x128xf32> -> vector<8x128xf32>
    %c1_13 = arith.constant 1 : index
    %c0_14 = arith.constant 0 : index
    %c0_15 = arith.constant 0 : index
    %16 = vector.load %arg3[%c1_13, %c0_14, %c0_15] : memref<3x1x128xf32, #tpu.memory_space<vmem>>, vector<1x1x128xf32>
    %17 = vector.shape_cast %16 : vector<1x1x128xf32> to vector<1x128xf32>
    %18 = vector.broadcast %17 : vector<1x128xf32> to vector<8x128xf32>
    %19 = arith.addf %15, %18 : vector<8x128xf32>
    %20 = arith.mulf %0, %19 : vector<8x128xf32>
    %21 = arith.addf %9, %20 : vector<8x128xf32>
    %c1_16 = arith.constant 1 : index
    %c0_17 = arith.constant 0 : index
    %c0_18 = arith.constant 0 : index
    %22 = vector.load %arg4[%c1_16, %c0_17, %c0_18] : memref<3x8x128xf32, #tpu.memory_space<vmem>>, vector<1x8x128xf32>
    %23 = vector.shape_cast %22 : vector<1x8x128xf32> to vector<8x128xf32>
    %24 = vector.shape_cast %21 : vector<8x128xf32> to vector<1x8x128xf32>
    tpu.vector_store %arg4[%c1_16, %c0_17, %c0_18], %24 {strides = array<i32>} : memref<3x8x128xf32, #tpu.memory_space<vmem>>, vector<1x8x128xf32>,
    %c2 = arith.constant 2 : index
    %c0_19 = arith.constant 0 : index
    %c0_20 = arith.constant 0 : index
    %25 = vector.load %arg2[%c2, %c0_19, %c0_20] : memref<3x128x128xf32, #tpu.memory_space<vmem>>, vector<1x128x128xf32>
    %26 = vector.shape_cast %25 : vector<1x128x128xf32> to vector<128x128xf32>
    %cst_21 = arith.constant dense<0.000000e+00> : vector<8x128xf32>
    %27 = tpu.matmul %21, %26, %cst_21 {dimension_numbers = #tpu.dot_dimension_numbers<[1], [0], [0], [1], [0, 0, 1, 1], [], []>} : vector<8x128xf32>, vector<128x128xf32>, vector<8x128xf32> -> vector<8x128xf32>
    %c2_22 = arith.constant 2 : index
    %c0_23 = arith.constant 0 : index
    %c0_24 = arith.constant 0 : index
    %28 = vector.load %arg3[%c2_22, %c0_23, %c0_24] : memref<3x1x128xf32, #tpu.memory_space<vmem>>, vector<1x1x128xf32>
    %29 = vector.shape_cast %28 : vector<1x1x128xf32> to vector<1x128xf32>
    %30 = vector.broadcast %29 : vector<1x128xf32> to vector<8x128xf32>
    %31 = arith.addf %27, %30 : vector<8x128xf32>
    %32 = arith.mulf %0, %31 : vector<8x128xf32>
    %33 = arith.addf %21, %32 : vector<8x128xf32>
    %c2_25 = arith.constant 2 : index
    %c0_26 = arith.constant 0 : index
    %c0_27 = arith.constant 0 : index
    %34 = vector.load %arg4[%c2_25, %c0_26, %c0_27] : memref<3x8x128xf32, #tpu.memory_space<vmem>>, vector<1x8x128xf32>
    %35 = vector.shape_cast %34 : vector<1x8x128xf32> to vector<8x128xf32>
    %36 = vector.shape_cast %33 : vector<8x128xf32> to vector<1x8x128xf32>
    tpu.vector_store %arg4[%c2_25, %c0_26, %c0_27], %36 {strides = array<i32>} : memref<3x8x128xf32, #tpu.memory_space<vmem>>, vector<1x8x128xf32>,
    return
  }
  func.func @transform_0(%arg0: i32) -> (i32, i32) {
    %c0_i32 = arith.constant 0 : i32
    %c0_i32_0 = arith.constant 0 : i32
    return %arg0, %c0_i32 : i32, i32
  }
  func.func @transform_1(%arg0: i32) -> (i32, i32, i32) {
    %c0_i32 = arith.constant 0 : i32
    %c0_i32_0 = arith.constant 0 : i32
    %c0_i32_1 = arith.constant 0 : i32
    %c0_i32_2 = arith.constant 0 : i32
    return %c0_i32, %c0_i32_0, %c0_i32_1 : i32, i32, i32
  }
  func.func @transform_2(%arg0: i32) -> (i32, i32, i32) {
    %c0_i32 = arith.constant 0 : i32
    %c0_i32_0 = arith.constant 0 : i32
    %c0_i32_1 = arith.constant 0 : i32
    %c0_i32_2 = arith.constant 0 : i32
    return %c0_i32, %c0_i32_0, %c0_i32_1 : i32, i32, i32
  }
  func.func @transform_3(%arg0: i32) -> (i32, i32, i32) {
    %c0_i32 = arith.constant 0 : i32
    %c0_i32_0 = arith.constant 0 : i32
    %c0_i32_1 = arith.constant 0 : i32
    return %c0_i32, %arg0, %c0_i32_0 : i32, i32, i32
  }
}

</mosaic_0001>

<llo_original>
// kernel: tpu_custom_call.1
$region0: #{tpu_custom_call.1}
  #allocation0 [shape = 'u32[]', space=smem, size = 0x4, offset = 0x4, fixed_abs, tag = 'smem constant byte address 0x4 - core index']
  #allocation1 [shape = 'u32[144,128]{1,0:T(1,128)}', space=vmem, size = 0x12000, scoped, tag = 'internal scratch']
  %s0 = inlined_call_operand.hbm [shape: f32[8,128], index: 0, kind: input, shape index: {}]
  %s1 = inlined_call_operand.hbm [shape: f32[3,128,128], index: 1, kind: input, shape index: {}]
  %s2 = inlined_call_operand.vmem [shape: f32[3,1,128], index: 2, kind: input, shape index: {}]
  %s3 = inlined_call_operand.hbm [shape: f32[3,8,128], index: 3, kind: output, shape index: {}]
  %s4 = sld [smem:[#allocation0]]
  $region30: #{tpu_custom_call.1} parent=0
    _
  %s6 = ssub.s32 1, %s4
  %s7 = scalar_select 0, %s6, %s4
  $region1: #{tpu_custom_call.1} parent=0
    #allocation2 [shape = 'u8[4096]{0}', space=vmem, size = 0x1000, scoped, tag = 'input window, operand 0, single buffered']
    #allocation3 [shape = 's32[1]{0}', space=sflag, size = 0x4, scoped, tag = 'scoped memory for tpu_custom_call.1']
    #allocation4 [shape = 's32[1]{0}', space=sflag, size = 0x4, scoped, tag = 'scoped memory for tpu_custom_call.1']
    #allocation5 [shape = 'u8[196608]{0}', space=vmem, size = 0x30000, scoped, tag = 'input window, operand 1, single buffered']
    #allocation6 [shape = 's32[1]{0}', space=sflag, size = 0x4, scoped, tag = 'scoped memory for tpu_custom_call.1']
    #allocation7 [shape = 'u8[12288]{0}', space=vmem, size = 0x3000, scoped, tag = 'output window, operand 0, single buffered']
    %8 = vsyncpa [#allocation3], 0
    %9 = vsyncpa [#allocation6], 0
    %10 = vsyncpa [#allocation4], 0
    // Predicated region
    $region2: #{tpu_custom_call.1} parent=1 // pred_check
      _
    $region3: #{tpu_custom_call.1} parent=1 // pred_check_branch
      %12 = sbr.rel (0) target = $region5
    $region4: #{tpu_custom_call.1} parent=1 // pred_region
      %s14 = ssub.s32 128, 128
      %15 = vsyncadd [#allocation3], %s14
      %s17 = sshll.u32 [#allocation2], 4
      %s18 = int_to_ptr.vmem [resolvable:$true] %s17
      %20 = dma.hbm_to_vmem [thread:$0]  %s0, 128, %s18, [#allocation3]
    $region5: #{tpu_custom_call.1} parent=1 // pred_fallthru
      _
    // Predicated region
    $region6: #{tpu_custom_call.1} parent=1 // pred_check
      _
    $region7: #{tpu_custom_call.1} parent=1 // pred_check_branch
      %22 = sbr.rel (0) target = $region9
    $region8: #{tpu_custom_call.1} parent=1 // pred_region
      %s24 = ssub.s32 6144, 6144
      %25 = vsyncadd [#allocation6], %s24
      %s26 = sshll.u32 [#allocation5], 4
      %s27 = int_to_ptr.vmem [resolvable:$true] %s26
      %32 = dma.hbm_to_vmem [thread:$0]  %s1, 6144, %s27, [#allocation6], 128, 128, 8
    $region9: #{tpu_custom_call.1} parent=1 // pred_fallthru
      _
    // Predicated region
    $region10: #{tpu_custom_call.1} parent=1 // pred_check
      _
    $region11: #{tpu_custom_call.1} parent=1 // pred_check_branch
      %34 = sbr.rel (0) target = $region13
    $region12: #{tpu_custom_call.1} parent=1 // pred_region
      _
    $region13: #{tpu_custom_call.1} parent=1 // pred_fallthru
      _
    // Predicated region
    $region14: #{tpu_custom_call.1} parent=1 // pred_check
      _
    $region15: #{tpu_custom_call.1} parent=1 // pred_check_branch
      %36 = sbr.rel (0) target = $region17
    $region16: #{tpu_custom_call.1} parent=1 // pred_region
      %37 = dma.done [#allocation3], 128
    $region17: #{tpu_custom_call.1} parent=1 // pred_fallthru
      _
    // Predicated region
    $region18: #{tpu_custom_call.1} parent=1 // pred_check
      _
    $region19: #{tpu_custom_call.1} parent=1 // pred_check_branch
      %39 = sbr.rel (0) target = $region21
    $region20: #{tpu_custom_call.1} parent=1 // pred_region
      %40 = dma.done [#allocation6], 6144
    $region21: #{tpu_custom_call.1} parent=1 // pred_fallthru
      _
    %v41 = vld [vmem:[#allocation2] sm:$0xff]
    %v42 = vld [vmem:[#allocation5] sm:$0xff]
    %v43 = vld [vmem:[#allocation5 + $0x8] sm:$0xff]
    %v44 = vld [vmem:[#allocation5 + $0x10] sm:$0xff]
    %v45 = vld [vmem:[#allocation5 + $0x18] sm:$0xff]
    %v46 = vld [vmem:[#allocation5 + $0x20] sm:$0xff]
    %v47 = vld [vmem:[#allocation5 + $0x28] sm:$0xff]
    %v48 = vld [vmem:[#allocation5 + $0x30] sm:$0xff]
    %v49 = vld [vmem:[#allocation5 + $0x38] sm:$0xff]
    %v50 = vld [vmem:[#allocation5 + $0x40] sm:$0xff]
    %v51 = vld [vmem:[#allocation5 + $0x48] sm:$0xff]
    %v52 = vld [vmem:[#allocation5 + $0x50] sm:$0xff]
    %v53 = vld [vmem:[#allocation5 + $0x58] sm:$0xff]
    %v54 = vld [vmem:[#allocation5 + $0x60] sm:$0xff]
    %v55 = vld [vmem:[#allocation5 + $0x68] sm:$0xff]
    %v56 = vld [vmem:[#allocation5 + $0x70] sm:$0xff]
    %v57 = vld [vmem:[#allocation5 + $0x78] sm:$0xff]
    %v58 = vld [vmem:[%s2] sm:$0x1]
    %v60 = vlaneseq
    %v61 = vshrl.u32 %v60, 7
    %v62 = vsub.s32 0, %v61
    %v63 = vrot.slane %v58, %v62
    %65 = vmatprep.subr.mxu0 0.0
    %66 = vmatpush1.msra.mxu0 %v57
    %67 = vmatprep.subr.mxu0 0.0
    %68 = vmatpush1.msra.mxu0 %v56
    %69 = vmatprep.subr.mxu0 0.0
    %70 = vmatpush1.msra.mxu0 %v55
    %71 = vmatprep.subr.mxu0 0.0
    %72 = vmatpush1.msra.mxu0 %v54
    %73 = vmatprep.subr.mxu0 0.0
    %74 = vmatpush1.msra.mxu0 %v53
    %75 = vmatprep.subr.mxu0 0.0
    %76 = vmatpush1.msra.mxu0 %v52
    %77 = vmatprep.subr.mxu0 0.0
    %78 = vmatpush1.msra.mxu0 %v51
    %79 = vmatprep.subr.mxu0 0.0
    %80 = vmatpush1.msra.mxu0 %v50
    %81 = vmatprep.subr.mxu0 0.0
    %82 = vmatpush1.msra.mxu0 %v49
    %83 = vmatprep.subr.mxu0 0.0
    %84 = vmatpush1.msra.mxu0 %v48
    %85 = vmatprep.subr.mxu0 0.0
    %86 = vmatpush1.msra.mxu0 %v47
    %87 = vmatprep.subr.mxu0 0.0
    %88 = vmatpush1.msra.mxu0 %v46
    %89 = vmatprep.subr.mxu0 0.0
    %90 = vmatpush1.msra.mxu0 %v45
    %91 = vmatprep.subr.mxu0 0.0
    %92 = vmatpush1.msra.mxu0 %v44
    %93 = vmatprep.subr.mxu0 0.0
    %94 = vmatpush1.msra.mxu0 %v43
    %95 = vmatprep.subr.mxu0 0.0
    %96 = vmatpush1.msra.mxu0 %v42
    %97 = vmatprep.subr.mxu0 0.0
    %98 = vmatpush2.msra.mxu0 0.0
    %99 = vmatprep.subr.mxu0 0.0
    %100 = vmatpush2.msra.mxu0 0.0
    %101 = vmatprep.subr.mxu0 0.0
    %102 = vmatpush2.msra.mxu0 0.0
    %103 = vmatprep.subr.mxu0 0.0
    %104 = vmatpush2.msra.mxu0 0.0
    %105 = vmatprep.subr.mxu0 0.0
    %106 = vmatpush2.msra.mxu0 0.0
    %107 = vmatprep.subr.mxu0 0.0
    %108 = vmatpush2.msra.mxu0 0.0
    %109 = vmatprep.subr.mxu0 0.0
    %110 = vmatpush2.msra.mxu0 0.0
    %111 = vmatprep.subr.mxu0 0.0
    %112 = vmatpush2.msra.mxu0 0.0
    %113 = vmatprep.subr.mxu0 0.0
    %114 = vmatpush2.msra.mxu0 0.0
    %115 = vmatprep.subr.mxu0 0.0
    %116 = vmatpush2.msra.mxu0 0.0
    %117 = vmatprep.subr.mxu0 0.0
    %118 = vmatpush2.msra.mxu0 0.0
    %119 = vmatprep.subr.mxu0 0.0
    %120 = vmatpush2.msra.mxu0 0.0
    %121 = vmatprep.subr.mxu0 0.0
    %122 = vmatpush2.msra.mxu0 0.0
    %123 = vmatprep.subr.mxu0 0.0
    %124 = vmatpush2.msra.mxu0 0.0
    %125 = vmatprep.subr.mxu0 0.0
    %126 = vmatpush2.msra.mxu0 0.0
    %127 = vmatprep.subr.mxu0 0.0
    %128 = vmatpush2.msra.mxu0 0.0
    %129 = vmatprep.mubr.f32.mxu0 0.0
    %130 = vmatmul.mubr.f32.gmra.mxu0 %v41
    %v131 = vpop.f32.mrf.mxu0
    %v132 = vadd.f32 %v63, %v131
    %v133 = vpop.f32.mrf.mxu0
    %134 = vdwg.mxu0
    %v135 = vmul.f32 %v41, %v132
    %v136 = vadd.f32 %v41, %v135
    %137 = vst [vmem:[#allocation7] sm:$0xff] %v136
    %s138 = scalar_lea.vmem [#allocation5], 128
    %v139 = vld [vmem:[%s138] sm:$0xff]
    %v140 = vld [vmem:[%s138 + $0x8] sm:$0xff]
    %v141 = vld [vmem:[%s138 + $0x10] sm:$0xff]
    %v142 = vld [vmem:[%s138 + $0x18] sm:$0xff]
    %v143 = vld [vmem:[%s138 + $0x20] sm:$0xff]
    %v144 = vld [vmem:[%s138 + $0x28] sm:$0xff]
    %v145 = vld [vmem:[%s138 + $0x30] sm:$0xff]
    %v146 = vld [vmem:[%s138 + $0x38] sm:$0xff]
    %v147 = vld [vmem:[%s138 + $0x40] sm:$0xff]
    %v148 = vld [vmem:[%s138 + $0x48] sm:$0xff]
    %v149 = vld [vmem:[%s138 + $0x50] sm:$0xff]
    %v150 = vld [vmem:[%s138 + $0x58] sm:$0xff]
    %v151 = vld [vmem:[%s138 + $0x60] sm:$0xff]
    %v152 = vld [vmem:[%s138 + $0x68] sm:$0xff]
    %v153 = vld [vmem:[%s138 + $0x70] sm:$0xff]
    %v154 = vld [vmem:[%s138 + $0x78] sm:$0xff]
    %s155 = scalar_lea.vmem %s2, 1
    %v156 = vld [vmem:[%s155] sm:$0x1]
    %v158 = vlaneseq
    %v159 = vshrl.u32 %v158, 7
    %v160 = vsub.s32 0, %v159
    %v161 = vrot.slane %v156, %v160
    %163 = vmatprep.subr.mxu0 0.0
    %164 = vmatpush1.msra.mxu0 %v154
    %165 = vmatprep.subr.mxu0 0.0
    %166 = vmatpush1.msra.mxu0 %v153
    %167 = vmatprep.subr.mxu0 0.0
    %168 = vmatpush1.msra.mxu0 %v152
    %169 = vmatprep.subr.mxu0 0.0
    %170 = vmatpush1.msra.mxu0 %v151
    %171 = vmatprep.subr.mxu0 0.0
    %172 = vmatpush1.msra.mxu0 %v150
    %173 = vmatprep.subr.mxu0 0.0
    %174 = vmatpush1.msra.mxu0 %v149
    %175 = vmatprep.subr.mxu0 0.0
    %176 = vmatpush1.msra.mxu0 %v148
    %177 = vmatprep.subr.mxu0 0.0
    %178 = vmatpush1.msra.mxu0 %v147
    %179 = vmatprep.subr.mxu0 0.0
    %180 = vmatpush1.msra.mxu0 %v146
    %181 = vmatprep.subr.mxu0 0.0
    %182 = vmatpush1.msra.mxu0 %v145
    %183 = vmatprep.subr.mxu0 0.0
    %184 = vmatpush1.msra.mxu0 %v144
    %185 = vmatprep.subr.mxu0 0.0
    %186 = vmatpush1.msra.mxu0 %v143
    %187 = vmatprep.subr.mxu0 0.0
    %188 = vmatpush1.msra.mxu0 %v142
    %189 = vmatprep.subr.mxu0 0.0
    %190 = vmatpush1.msra.mxu0 %v141
    %191 = vmatprep.subr.mxu0 0.0
    %192 = vmatpush1.msra.mxu0 %v140
    %193 = vmatprep.subr.mxu0 0.0
    %194 = vmatpush1.msra.mxu0 %v139
    %195 = vmatprep.subr.mxu0 0.0
    %196 = vmatpush2.msra.mxu0 0.0
    %197 = vmatprep.subr.mxu0 0.0
    %198 = vmatpush2.msra.mxu0 0.0
    %199 = vmatprep.subr.mxu0 0.0
    %200 = vmatpush2.msra.mxu0 0.0
    %201 = vmatprep.subr.mxu0 0.0
    %202 = vmatpush2.msra.mxu0 0.0
    %203 = vmatprep.subr.mxu0 0.0
    %204 = vmatpush2.msra.mxu0 0.0
    %205 = vmatprep.subr.mxu0 0.0
    %206 = vmatpush2.msra.mxu0 0.0
    %207 = vmatprep.subr.mxu0 0.0
    %208 = vmatpush2.msra.mxu0 0.0
    %209 = vmatprep.subr.mxu0 0.0
    %210 = vmatpush2.msra.mxu0 0.0
    %211 = vmatprep.subr.mxu0 0.0
    %212 = vmatpush2.msra.mxu0 0.0
    %213 = vmatprep.subr.mxu0 0.0
    %214 = vmatpush2.msra.mxu0 0.0
    %215 = vmatprep.subr.mxu0 0.0
    %216 = vmatpush2.msra.mxu0 0.0
    %217 = vmatprep.subr.mxu0 0.0
    %218 = vmatpush2.msra.mxu0 0.0
    %219 = vmatprep.subr.mxu0 0.0
    %220 = vmatpush2.msra.mxu0 0.0
    %221 = vmatprep.subr.mxu0 0.0
    %222 = vmatpush2.msra.mxu0 0.0
    %223 = vmatprep.subr.mxu0 0.0
    %224 = vmatpush2.msra.mxu0 0.0
    %225 = vmatprep.subr.mxu0 0.0
    %226 = vmatpush2.msra.mxu0 0.0
    %227 = vmatprep.mubr.f32.mxu0 0.0
    %228 = vmatmul.mubr.f32.gmra.mxu0 %v136
    %v229 = vpop.f32.mrf.mxu0
    %v230 = vadd.f32 %v161, %v229
    %v231 = vpop.f32.mrf.mxu0
    %232 = vdwg.mxu0
    %v233 = vmul.f32 %v41, %v230
    %v234 = vadd.f32 %v136, %v233
    %s235 = scalar_lea.vmem [#allocation7], 8
    %236 = vst [vmem:[%s235] sm:$0xff] %v234
    %s237 = scalar_lea.vmem [#allocation5], 256
    %v238 = vld [vmem:[%s237] sm:$0xff]
    %v239 = vld [vmem:[%s237 + $0x8] sm:$0xff]
    %v240 = vld [vmem:[%s237 + $0x10] sm:$0xff]
    %v241 = vld [vmem:[%s237 + $0x18] sm:$0xff]
    %v242 = vld [vmem:[%s237 + $0x20] sm:$0xff]
    %v243 = vld [vmem:[%s237 + $0x28] sm:$0xff]
    %v244 = vld [vmem:[%s237 + $0x30] sm:$0xff]
    %v245 = vld [vmem:[%s237 + $0x38] sm:$0xff]
    %v246 = vld [vmem:[%s237 + $0x40] sm:$0xff]
    %v247 = vld [vmem:[%s237 + $0x48] sm:$0xff]
    %v248 = vld [vmem:[%s237 + $0x50] sm:$0xff]
    %v249 = vld [vmem:[%s237 + $0x58] sm:$0xff]
    %v250 = vld [vmem:[%s237 + $0x60] sm:$0xff]
    %v251 = vld [vmem:[%s237 + $0x68] sm:$0xff]
    %v252 = vld [vmem:[%s237 + $0x70] sm:$0xff]
    %v253 = vld [vmem:[%s237 + $0x78] sm:$0xff]
    %s254 = scalar_lea.vmem %s2, 2
    %v255 = vld [vmem:[%s254] sm:$0x1]
    %v257 = vlaneseq
    %v258 = vshrl.u32 %v257, 7
    %v259 = vsub.s32 0, %v258
    %v260 = vrot.slane %v255, %v259
    %262 = vmatprep.subr.mxu0 0.0
    %263 = vmatpush1.msra.mxu0 %v253
    %264 = vmatprep.subr.mxu0 0.0
    %265 = vmatpush1.msra.mxu0 %v252
    %266 = vmatprep.subr.mxu0 0.0
    %267 = vmatpush1.msra.mxu0 %v251
    %268 = vmatprep.subr.mxu0 0.0
    %269 = vmatpush1.msra.mxu0 %v250
    %270 = vmatprep.subr.mxu0 0.0
    %271 = vmatpush1.msra.mxu0 %v249
    %272 = vmatprep.subr.mxu0 0.0
    %273 = vmatpush1.msra.mxu0 %v248
    %274 = vmatprep.subr.mxu0 0.0
    %275 = vmatpush1.msra.mxu0 %v247
    %276 = vmatprep.subr.mxu0 0.0
    %277 = vmatpush1.msra.mxu0 %v246
    %278 = vmatprep.subr.mxu0 0.0
    %279 = vmatpush1.msra.mxu0 %v245
    %280 = vmatprep.subr.mxu0 0.0
    %281 = vmatpush1.msra.mxu0 %v244
    %282 = vmatprep.subr.mxu0 0.0
    %283 = vmatpush1.msra.mxu0 %v243
    %284 = vmatprep.subr.mxu0 0.0
    %285 = vmatpush1.msra.mxu0 %v242
    %286 = vmatprep.subr.mxu0 0.0
    %287 = vmatpush1.msra.mxu0 %v241
    %288 = vmatprep.subr.mxu0 0.0
    %289 = vmatpush1.msra.mxu0 %v240
    %290 = vmatprep.subr.mxu0 0.0
    %291 = vmatpush1.msra.mxu0 %v239
    %292 = vmatprep.subr.mxu0 0.0
    %293 = vmatpush1.msra.mxu0 %v238
    %294 = vmatprep.subr.mxu0 0.0
    %295 = vmatpush2.msra.mxu0 0.0
    %296 = vmatprep.subr.mxu0 0.0
    %297 = vmatpush2.msra.mxu0 0.0
    %298 = vmatprep.subr.mxu0 0.0
    %299 = vmatpush2.msra.mxu0 0.0
    %300 = vmatprep.subr.mxu0 0.0
    %301 = vmatpush2.msra.mxu0 0.0
    %302 = vmatprep.subr.mxu0 0.0
    %303 = vmatpush2.msra.mxu0 0.0
    %304 = vmatprep.subr.mxu0 0.0
    %305 = vmatpush2.msra.mxu0 0.0
    %306 = vmatprep.subr.mxu0 0.0
    %307 = vmatpush2.msra.mxu0 0.0
    %308 = vmatprep.subr.mxu0 0.0
    %309 = vmatpush2.msra.mxu0 0.0
    %310 = vmatprep.subr.mxu0 0.0
    %311 = vmatpush2.msra.mxu0 0.0
    %312 = vmatprep.subr.mxu0 0.0
    %313 = vmatpush2.msra.mxu0 0.0
    %314 = vmatprep.subr.mxu0 0.0
    %315 = vmatpush2.msra.mxu0 0.0
    %316 = vmatprep.subr.mxu0 0.0
    %317 = vmatpush2.msra.mxu0 0.0
    %318 = vmatprep.subr.mxu0 0.0
    %319 = vmatpush2.msra.mxu0 0.0
    %320 = vmatprep.subr.mxu0 0.0
    %321 = vmatpush2.msra.mxu0 0.0
    %322 = vmatprep.subr.mxu0 0.0
    %323 = vmatpush2.msra.mxu0 0.0
    %324 = vmatprep.subr.mxu0 0.0
    %325 = vmatpush2.msra.mxu0 0.0
    %326 = vmatprep.mubr.f32.mxu0 0.0
    %327 = vmatmul.mubr.f32.gmra.mxu0 %v234
    %v328 = vpop.f32.mrf.mxu0
    %v329 = vadd.f32 %v260, %v328
    %v330 = vpop.f32.mrf.mxu0
    %331 = vdwg.mxu0
    %v332 = vmul.f32 %v41, %v329
    %v333 = vadd.f32 %v234, %v332
    %s334 = scalar_lea.vmem [#allocation7], 16
    %335 = vst [vmem:[%s334] sm:$0xff] %v333
    // Predicated region
    $region22: #{tpu_custom_call.1} parent=1 // pred_check
      _
    $region23: #{tpu_custom_call.1} parent=1 // pred_check_branch
      %337 = sbr.rel (0) target = $region25
    $region24: #{tpu_custom_call.1} parent=1 // pred_region
      %s339 = ssub.s32 384, 384
      %340 = vsyncadd [#allocation4], %s339
      %s341 = sshll.u32 [#allocation7], 4
      %s342 = int_to_ptr.vmem [resolvable:$true] %s341
      %347 = dma.vmem_to_hbm [thread:$0]  %s342, 384, %s3, [#allocation4], 128, 128, 8
    $region25: #{tpu_custom_call.1} parent=1 // pred_fallthru
      _
    // Predicated region
    $region26: #{tpu_custom_call.1} parent=1 // pred_check
      _
    $region27: #{tpu_custom_call.1} parent=1 // pred_check_branch
      %349 = sbr.rel (0) target = $region29
    $region28: #{tpu_custom_call.1} parent=1 // pred_region
      %350 = dma.done [#allocation4], 384
    $region29: #{tpu_custom_call.1} parent=1 // pred_fallthru
      _
    %351 = vsyncpa [#allocation3], 1
    %352 = vsyncpa [#allocation6], 1
    %353 = vsyncpa [#allocation4], 1

</llo_original>
